<compile_context>
chip_gen: v7x
topology: tpu7x:2x2x1
jax: 0.10.0
libtpu: 0.0.40
codegen_flags: <defaults>
</compile_context>

<pallas_src>
import math

import jax
import jax.numpy as jnp
from jax.experimental import pallas as pl
from jax.experimental.pallas import tpu as pltpu

LANE = 128      # TPU lane width (last-dim granularity)
SUBLANE = 8     # TPU sublane granularity (second-to-last dim)
NEG_SLOPE = 0.2


def _round_up(x: int, m: int) -> int:
    return ((x + m - 1) // m) * m


def _make_mlp_kernel(num_layers: int):
    """Kernel body.

    refs = (x, W0, b0, W1, b1, ..., W_{L-1}, b_{L-1}, out)
    x is the already-concatenated, lane-padded generator input; every weight/bias has
    lane dims padded to multiples of 128, so all matmuls and the final store are
    lane-dense (unmasked vst).
    """

    def kernel(x_ref, *rest):
        o_ref = rest[-1]
        p_refs = rest[:-1]

        h = x_ref[...]
        for i in range(num_layers):
            w = p_refs[2 * i][...]
            b = p_refs[2 * i + 1][...]
            h = jnp.dot(h, w, preferred_element_type=jnp.float32) + b
            if i < num_layers - 1:
                # LeakyReLU(negative_slope=0.2); Dropout is identity in eval mode.
                h = jnp.where(h > 0, h, NEG_SLOPE * h)

        o_ref[...] = h.astype(o_ref.dtype)

    return kernel


def dynamic_substructure_generator(feats, noise, padded_params, out_dim,
                                   *, block_b: int = 512, min_grid_steps: int = 1):
    """
    feats         : [B, input_dim]   float32
    noise         : [B, noise_dim]   float32
    padded_params : list of (W, b) with BOTH dims padded to multiples of 128
                    (zero padding -> forward no-op); W0 rows padded so layer 0 is a
                    single lane-dense matmul against the padded concat input.
    out_dim       : logical output width.
    block_b       : max batch-rows per grid step (big tiles amortize per-step overhead).
    min_grid_steps: set to 2 on v7x so the parallel grid feeds both TensorCores;
                    leave 1 on single-TC v5e/v6e (one big tile is fastest).
    Returns [B, out_dim] float32.
    """
    num_layers = len(padded_params)
    B = feats.shape[0]
    k0_p = padded_params[0][0].shape[0]     # padded concat dim (multiple of 128)
    out_p = padded_params[-1][0].shape[1]   # padded output dim (multiple of 128)

    # Fused concat + lane-padding of the generator input (tiny; fuses under jit).
    x = jnp.concatenate([feats, noise], axis=1)
    k0 = x.shape[1]
    if k0_p != k0:
        x = jnp.pad(x, ((0, 0), (0, k0_p - k0)))

    # Row tile: as few grid steps as possible (each costs ~600 cycles of fixed overhead),
    # but at least `min_grid_steps` so a 2-TC chip (v7x) can shard the parallel axis.
    steps = max(min_grid_steps, pl.cdiv(B, block_b))
    tb = _round_up(pl.cdiv(B, steps), SUBLANE)
    Bp = _round_up(B, tb)
    if Bp != B:
        x = jnp.pad(x, ((0, Bp - B), (0, 0)))
    grid = (Bp // tb,)

    flat_inputs = [x]
    in_specs = [pl.BlockSpec((tb, k0_p), lambda i: (i, 0))]
    for w, b in padded_params:
        flat_inputs.append(w)
        flat_inputs.append(b)
        # Constant block index -> weights/biases stay VMEM-resident across grid steps.
        in_specs.append(pl.BlockSpec(w.shape, lambda i: (0, 0)))
        in_specs.append(pl.BlockSpec(b.shape, lambda i: (0, 0)))

    out_shape = jax.ShapeDtypeStruct((Bp, out_p), jnp.float32)
    out_spec = pl.BlockSpec((tb, out_p), lambda i: (i, 0))

    kernel = _make_mlp_kernel(num_layers)
    out = pl.pallas_call(
        kernel,
        out_shape=out_shape,
        grid=grid,
        in_specs=in_specs,
        out_specs=out_spec,
        compiler_params=pltpu.CompilerParams(
            dimension_semantics=("parallel",),
        ),
    )(*flat_inputs)

    # Only slice when padding actually happened; with lane-aligned out_dim and a batch
    # that's a whole number of tiles this is a no-op and the kernel output flows through.
    if Bp != B or out_p != out_dim:
        out = out[:B, :out_dim]
    return out


def init_params(key, input_dim, hidden_dim, noise_dim, num_layers, out_dim):
    """Xavier-normal weights, zero biases at LOGICAL shapes (matches module _init_weights)."""
    assert num_layers >= 2, "at least 2 layers"
    params = []
    current_dim = input_dim + noise_dim
    for i in range(num_layers):
        next_dim = hidden_dim if i < num_layers - 1 else out_dim
        key, sub = jax.random.split(key)
        std = math.sqrt(2.0 / (current_dim + next_dim))
        w = std * jax.random.normal(sub, (current_dim, next_dim), dtype=jnp.float32)
        b = jnp.zeros((1, next_dim), dtype=jnp.float32)
        params.append((w, b))
        current_dim = next_dim
    return params


def pad_params(params):
    """Zero-pad weights/biases so BOTH dims are multiples of 128.

    Padded rows multiply exact-zero padded activation lanes (and padded output lanes stay
    zero through bias + LeakyReLU), so the forward result is unchanged.
    """
    padded = []
    for w, b in params:
        in_d, out_d = w.shape
        in_p = _round_up(in_d, LANE)
        out_p = _round_up(out_d, LANE)
        wp = jnp.zeros((in_p, out_p), jnp.float32).at[:in_d, :out_d].set(w)
        bp = jnp.zeros((1, out_p), jnp.float32).at[:, :out_d].set(b)
        padded.append((wp, bp))
    return padded


def reference_forward(feats, noise, params, num_layers):
    h = jnp.concatenate([feats, noise], axis=1)
    for i, (w, b) in enumerate(params):
        h = h @ w + b
        if i < num_layers - 1:
            h = jnp.where(h > 0, h, NEG_SLOPE * h)
    return h


if __name__ == "__main__":
    # Small, module-consistent shapes. out_dim defaults to hidden_dim (=128 here), so the
    # kernel output is already lane-exact and no post-kernel slice copy is emitted.
    batch = 256
    input_dim = 40
    hidden_dim = 128
    noise_dim = 24
    num_layers = 3
    out_dim = hidden_dim

    key = jax.random.PRNGKey(0)
    k_feats, k_noise, k_params = jax.random.split(key, 3)

    feats = jax.random.normal(k_feats, (batch, input_dim), dtype=jnp.float32)
    noise = jax.random.normal(k_noise, (batch, noise_dim), dtype=jnp.float32)

    params = init_params(k_params, input_dim, hidden_dim, noise_dim, num_layers, out_dim)
    padded = pad_params(params)

    fwd = jax.jit(
        lambda f, n: dynamic_substructure_generator(f, n, padded, out_dim, block_b=512)
    )
    out = jax.block_until_ready(fwd(feats, noise))

    # Sanity check against a pure-JAX reference on the unpadded parameters.
    ref = reference_forward(feats, noise, params, num_layers)
    assert out.shape == (batch, out_dim)
    assert jnp.allclose(out, ref, atol=1e-3, rtol=1e-3), "mismatch vs JAX reference"

    print("KERNEL_OK")
</pallas_src>

<mosaic_0001>
module attributes {stable_mosaic.version = 11 : i64} {
  func.func @kernel(%arg0: i32, %arg1: memref<256x128xf32, #tpu.memory_space<vmem>>, %arg2: memref<128x128xf32, #tpu.memory_space<vmem>>, %arg3: memref<1x128xf32, #tpu.memory_space<vmem>>, %arg4: memref<128x128xf32, #tpu.memory_space<vmem>>, %arg5: memref<1x128xf32, #tpu.memory_space<vmem>>, %arg6: memref<128x128xf32, #tpu.memory_space<vmem>>, %arg7: memref<1x128xf32, #tpu.memory_space<vmem>>, %arg8: memref<256x128xf32, #tpu.memory_space<vmem>>) attributes {dimension_semantics = [#tpu.dimension_semantics<parallel>], iteration_bounds = array<i64: 1>, scalar_prefetch = 0 : i64, scratch_operands = 0 : i64, tpu.core_type = #tpu.core_type<tc>, window_params = [{transform_indices = @transform_0, window_bounds = array<i64: 256, 128>}, {pipeline_mode = #tpu.pipeline_mode<synchronous>, transform_indices = @transform_1, window_bounds = array<i64: 128, 128>}, {pipeline_mode = #tpu.pipeline_mode<synchronous>, transform_indices = @transform_2, window_bounds = array<i64: 1, 128>}, {pipeline_mode = #tpu.pipeline_mode<synchronous>, transform_indices = @transform_3, window_bounds = array<i64: 128, 128>}, {pipeline_mode = #tpu.pipeline_mode<synchronous>, transform_indices = @transform_4, window_bounds = array<i64: 1, 128>}, {pipeline_mode = #tpu.pipeline_mode<synchronous>, transform_indices = @transform_5, window_bounds = array<i64: 128, 128>}, {pipeline_mode = #tpu.pipeline_mode<synchronous>, transform_indices = @transform_6, window_bounds = array<i64: 1, 128>}, {transform_indices = @transform_7, window_bounds = array<i64: 256, 128>}]} {
    %c0 = arith.constant 0 : index
    %c0_0 = arith.constant 0 : index
    %0 = vector.load %arg1[%c0, %c0_0] : memref<256x128xf32, #tpu.memory_space<vmem>>, vector<256x128xf32>
    %c0_1 = arith.constant 0 : index
    %c0_2 = arith.constant 0 : index
    %1 = vector.load %arg2[%c0_1, %c0_2] : memref<128x128xf32, #tpu.memory_space<vmem>>, vector<128x128xf32>
    %c0_3 = arith.constant 0 : index
    %c0_4 = arith.constant 0 : index
    %2 = vector.load %arg3[%c0_3, %c0_4] : memref<1x128xf32, #tpu.memory_space<vmem>>, vector<1x128xf32>
    %cst = arith.constant dense<0.000000e+00> : vector<256x128xf32>
    %3 = tpu.matmul %0, %1, %cst {dimension_numbers = #tpu.dot_dimension_numbers<[1], [0], [0], [1], [0, 0, 1, 1], [], []>} : vector<256x128xf32>, vector<128x128xf32>, vector<256x128xf32> -> vector<256x128xf32>
    %4 = vector.broadcast %2 : vector<1x128xf32> to vector<256x128xf32>
    %5 = arith.addf %3, %4 : vector<256x128xf32>
    %cst_5 = arith.constant 0.000000e+00 : f32
    %6 = vector.broadcast %cst_5 : f32 to vector<256x128xf32>
    %7 = arith.cmpf ogt, %5, %6 : vector<256x128xf32>
    %cst_6 = arith.constant 2.000000e-01 : f32
    %8 = vector.broadcast %cst_6 : f32 to vector<256x128xf32>
    %9 = arith.mulf %8, %5 : vector<256x128xf32>
    %10 = arith.select %7, %5, %9 : vector<256x128xi1>, vector<256x128xf32>
    %c0_7 = arith.constant 0 : index
    %c0_8 = arith.constant 0 : index
    %11 = vector.load %arg4[%c0_7, %c0_8] : memref<128x128xf32, #tpu.memory_space<vmem>>, vector<128x128xf32>
    %c0_9 = arith.constant 0 : index
    %c0_10 = arith.constant 0 : index
    %12 = vector.load %arg5[%c0_9, %c0_10] : memref<1x128xf32, #tpu.memory_space<vmem>>, vector<1x128xf32>
    %cst_11 = arith.constant dense<0.000000e+00> : vector<256x128xf32>
    %13 = tpu.matmul %10, %11, %cst_11 {dimension_numbers = #tpu.dot_dimension_numbers<[1], [0], [0], [1], [0, 0, 1, 1], [], []>} : vector<256x128xf32>, vector<128x128xf32>, vector<256x128xf32> -> vector<256x128xf32>
    %14 = vector.broadcast %12 : vector<1x128xf32> to vector<256x128xf32>
    %15 = arith.addf %13, %14 : vector<256x128xf32>
    %cst_12 = arith.constant 0.000000e+00 : f32
    %16 = vector.broadcast %cst_12 : f32 to vector<256x128xf32>
    %17 = arith.cmpf ogt, %15, %16 : vector<256x128xf32>
    %cst_13 = arith.constant 2.000000e-01 : f32
    %18 = vector.broadcast %cst_13 : f32 to vector<256x128xf32>
    %19 = arith.mulf %18, %15 : vector<256x128xf32>
    %20 = arith.select %17, %15, %19 : vector<256x128xi1>, vector<256x128xf32>
    %c0_14 = arith.constant 0 : index
    %c0_15 = arith.constant 0 : index
    %21 = vector.load %arg6[%c0_14, %c0_15] : memref<128x128xf32, #tpu.memory_space<vmem>>, vector<128x128xf32>
    %c0_16 = arith.constant 0 : index
    %c0_17 = arith.constant 0 : index
    %22 = vector.load %arg7[%c0_16, %c0_17] : memref<1x128xf32, #tpu.memory_space<vmem>>, vector<1x128xf32>
    %cst_18 = arith.constant dense<0.000000e+00> : vector<256x128xf32>
    %23 = tpu.matmul %20, %21, %cst_18 {dimension_numbers = #tpu.dot_dimension_numbers<[1], [0], [0], [1], [0, 0, 1, 1], [], []>} : vector<256x128xf32>, vector<128x128xf32>, vector<256x128xf32> -> vector<256x128xf32>
    %24 = vector.broadcast %22 : vector<1x128xf32> to vector<256x128xf32>
    %25 = arith.addf %23, %24 : vector<256x128xf32>
    %c0_19 = arith.constant 0 : index
    %c0_20 = arith.constant 0 : index
    %26 = vector.load %arg8[%c0_19, %c0_20] : memref<256x128xf32, #tpu.memory_space<vmem>>, vector<256x128xf32>
    tpu.vector_store %arg8[%c0_19, %c0_20], %25 {strides = array<i32>} : memref<256x128xf32, #tpu.memory_space<vmem>>, vector<256x128xf32>,
    return
  }
  func.func @transform_0(%arg0: i32) -> (i32, i32) {
    %c0_i32 = arith.constant 0 : i32
    %c0_i32_0 = arith.constant 0 : i32
    return %arg0, %c0_i32 : i32, i32
  }
  func.func @transform_1(%arg0: i32) -> (i32, i32) {
    %c0_i32 = arith.constant 0 : i32
    %c0_i32_0 = arith.constant 0 : i32
    %c0_i32_1 = arith.constant 0 : i32
    return %c0_i32, %c0_i32_0 : i32, i32
  }
  func.func @transform_2(%arg0: i32) -> (i32, i32) {
    %c0_i32 = arith.constant 0 : i32
    %c0_i32_0 = arith.constant 0 : i32
    %c0_i32_1 = arith.constant 0 : i32
    return %c0_i32, %c0_i32_0 : i32, i32
  }
  func.func @transform_3(%arg0: i32) -> (i32, i32) {
    %c0_i32 = arith.constant 0 : i32
    %c0_i32_0 = arith.constant 0 : i32
    %c0_i32_1 = arith.constant 0 : i32
    return %c0_i32, %c0_i32_0 : i32, i32
  }
  func.func @transform_4(%arg0: i32) -> (i32, i32) {
    %c0_i32 = arith.constant 0 : i32
    %c0_i32_0 = arith.constant 0 : i32
    %c0_i32_1 = arith.constant 0 : i32
    return %c0_i32, %c0_i32_0 : i32, i32
  }
  func.func @transform_5(%arg0: i32) -> (i32, i32) {
    %c0_i32 = arith.constant 0 : i32
    %c0_i32_0 = arith.constant 0 : i32
    %c0_i32_1 = arith.constant 0 : i32
    return %c0_i32, %c0_i32_0 : i32, i32
  }
  func.func @transform_6(%arg0: i32) -> (i32, i32) {
    %c0_i32 = arith.constant 0 : i32
    %c0_i32_0 = arith.constant 0 : i32
    %c0_i32_1 = arith.constant 0 : i32
    return %c0_i32, %c0_i32_0 : i32, i32
  }
  func.func @transform_7(%arg0: i32) -> (i32, i32) {
    %c0_i32 = arith.constant 0 : i32
    %c0_i32_0 = arith.constant 0 : i32
    return %arg0, %c0_i32 : i32, i32
  }
}

</mosaic_0001>

<llo_original>
// kernel: _lambda_.1
$region0: #{_lambda_.1}
  #allocation0 [shape = 'u32[]', space=smem, size = 0x4, offset = 0x4, fixed_abs, tag = 'smem constant byte address 0x4 - core index']
  #allocation1 [shape = 'u32[144,128]{1,0:T(1,128)}', space=vmem, size = 0x12000, scoped, tag = 'internal scratch']
  %s0 = inlined_call_operand.vmem [shape: f32[256,128], index: 0, kind: input, shape index: {}]
  %s1 = inlined_call_operand.vmem [shape: f32[128,128], index: 1, kind: input, shape index: {}]
  %s2 = inlined_call_operand.vmem [shape: f32[1,128], index: 2, kind: input, shape index: {}, may-alias: {2,4,6}]
  %s3 = inlined_call_operand.vmem [shape: f32[128,128], index: 3, kind: input, shape index: {}]
  %s4 = inlined_call_operand.vmem [shape: f32[1,128], index: 4, kind: input, shape index: {}, may-alias: {2,4,6}]
  %s5 = inlined_call_operand.vmem [shape: f32[128,128], index: 5, kind: input, shape index: {}]
  %s6 = inlined_call_operand.vmem [shape: f32[1,128], index: 6, kind: input, shape index: {}, may-alias: {2,4,6}]
  %s7 = inlined_call_operand.hbm [shape: f32[256,128], index: 7, kind: output, shape index: {}]
  %s8 = sld [smem:[#allocation0]]
  $region38: #{_lambda_.1} parent=0
    _
  %s10 = ssub.s32 1, %s8
  %s11 = scalar_select 0, %s10, %s8
  $region1: #{_lambda_.1} parent=0
    #allocation2 [shape = 'u8[131072]{0}', space=vmem, size = 0x20000, scoped, tag = 'output window, operand 0, single buffered']
    #allocation3 [shape = 's32[1]{0}', space=sflag, size = 0x4, scoped, tag = 'scoped memory for _lambda_.1']
    %12 = vsyncpa [#allocation3], 0
    // Predicated region
    $region2: #{_lambda_.1} parent=1 // pred_check
      _
    $region3: #{_lambda_.1} parent=1 // pred_check_branch
      %14 = sbr.rel (0) target = $region5
    $region4: #{_lambda_.1} parent=1 // pred_region
      _
    $region5: #{_lambda_.1} parent=1 // pred_fallthru
      _
    // Predicated region
    $region6: #{_lambda_.1} parent=1 // pred_check
      _
    $region7: #{_lambda_.1} parent=1 // pred_check_branch
      %16 = sbr.rel (0) target = $region9
    $region8: #{_lambda_.1} parent=1 // pred_region
      _
    $region9: #{_lambda_.1} parent=1 // pred_fallthru
      _
    // Predicated region
    $region10: #{_lambda_.1} parent=1 // pred_check
      _
    $region11: #{_lambda_.1} parent=1 // pred_check_branch
      %18 = sbr.rel (0) target = $region13
    $region12: #{_lambda_.1} parent=1 // pred_region
      _
    $region13: #{_lambda_.1} parent=1 // pred_fallthru
      _
    // Predicated region
    $region14: #{_lambda_.1} parent=1 // pred_check
      _
    $region15: #{_lambda_.1} parent=1 // pred_check_branch
      %20 = sbr.rel (0) target = $region17
    $region16: #{_lambda_.1} parent=1 // pred_region
      _
    $region17: #{_lambda_.1} parent=1 // pred_fallthru
      _
    // Predicated region
    $region18: #{_lambda_.1} parent=1 // pred_check
      _
    $region19: #{_lambda_.1} parent=1 // pred_check_branch
      %22 = sbr.rel (0) target = $region21
    $region20: #{_lambda_.1} parent=1 // pred_region
      _
    $region21: #{_lambda_.1} parent=1 // pred_fallthru
      _
    // Predicated region
    $region22: #{_lambda_.1} parent=1 // pred_check
      _
    $region23: #{_lambda_.1} parent=1 // pred_check_branch
      %24 = sbr.rel (0) target = $region25
    $region24: #{_lambda_.1} parent=1 // pred_region
      _
    $region25: #{_lambda_.1} parent=1 // pred_fallthru
      _
    // Predicated region
    $region26: #{_lambda_.1} parent=1 // pred_check
      _
    $region27: #{_lambda_.1} parent=1 // pred_check_branch
      %26 = sbr.rel (0) target = $region29
    $region28: #{_lambda_.1} parent=1 // pred_region
      _
    $region29: #{_lambda_.1} parent=1 // pred_fallthru
      _
    %v27 = vld [vmem:[%s0] sm:$0xff]
    %v28 = vld [vmem:[%s0 + $0x8] sm:$0xff]
    %v29 = vld [vmem:[%s0 + $0x10] sm:$0xff]
    %v30 = vld [vmem:[%s0 + $0x18] sm:$0xff]
    %v31 = vld [vmem:[%s0 + $0x20] sm:$0xff]
    %v32 = vld [vmem:[%s0 + $0x28] sm:$0xff]
    %v33 = vld [vmem:[%s0 + $0x30] sm:$0xff]
    %v34 = vld [vmem:[%s0 + $0x38] sm:$0xff]
    %v35 = vld [vmem:[%s0 + $0x40] sm:$0xff]
    %v36 = vld [vmem:[%s0 + $0x48] sm:$0xff]
    %v37 = vld [vmem:[%s0 + $0x50] sm:$0xff]
    %v38 = vld [vmem:[%s0 + $0x58] sm:$0xff]
    %v39 = vld [vmem:[%s0 + $0x60] sm:$0xff]
    %v40 = vld [vmem:[%s0 + $0x68] sm:$0xff]
    %v41 = vld [vmem:[%s0 + $0x70] sm:$0xff]
    %v42 = vld [vmem:[%s0 + $0x78] sm:$0xff]
    %v43 = vld [vmem:[%s0 + $0x80] sm:$0xff]
    %v44 = vld [vmem:[%s0 + $0x88] sm:$0xff]
    %v45 = vld [vmem:[%s0 + $0x90] sm:$0xff]
    %v46 = vld [vmem:[%s0 + $0x98] sm:$0xff]
    %v47 = vld [vmem:[%s0 + $0xa0] sm:$0xff]
    %v48 = vld [vmem:[%s0 + $0xa8] sm:$0xff]
    %v49 = vld [vmem:[%s0 + $0xb0] sm:$0xff]
    %v50 = vld [vmem:[%s0 + $0xb8] sm:$0xff]
    %v51 = vld [vmem:[%s0 + $0xc0] sm:$0xff]
    %v52 = vld [vmem:[%s0 + $0xc8] sm:$0xff]
    %v53 = vld [vmem:[%s0 + $0xd0] sm:$0xff]
    %v54 = vld [vmem:[%s0 + $0xd8] sm:$0xff]
    %v55 = vld [vmem:[%s0 + $0xe0] sm:$0xff]
    %v56 = vld [vmem:[%s0 + $0xe8] sm:$0xff]
    %v57 = vld [vmem:[%s0 + $0xf0] sm:$0xff]
    %v58 = vld [vmem:[%s0 + $0xf8] sm:$0xff]
    %v59 = vld [vmem:[%s1] sm:$0xff]
    %v60 = vld [vmem:[%s1 + $0x8] sm:$0xff]
    %v61 = vld [vmem:[%s1 + $0x10] sm:$0xff]
    %v62 = vld [vmem:[%s1 + $0x18] sm:$0xff]
    %v63 = vld [vmem:[%s1 + $0x20] sm:$0xff]
    %v64 = vld [vmem:[%s1 + $0x28] sm:$0xff]
    %v65 = vld [vmem:[%s1 + $0x30] sm:$0xff]
    %v66 = vld [vmem:[%s1 + $0x38] sm:$0xff]
    %v67 = vld [vmem:[%s1 + $0x40] sm:$0xff]
    %v68 = vld [vmem:[%s1 + $0x48] sm:$0xff]
    %v69 = vld [vmem:[%s1 + $0x50] sm:$0xff]
    %v70 = vld [vmem:[%s1 + $0x58] sm:$0xff]
    %v71 = vld [vmem:[%s1 + $0x60] sm:$0xff]
    %v72 = vld [vmem:[%s1 + $0x68] sm:$0xff]
    %v73 = vld [vmem:[%s1 + $0x70] sm:$0xff]
    %v74 = vld [vmem:[%s1 + $0x78] sm:$0xff]
    %v75 = vld [vmem:[%s2] sm:$0x1]
    %v77 = vlaneseq
    %v78 = vshrl.u32 %v77, 7
    %v79 = vsub.s32 0, %v78
    %v80 = vrot.slane %v75, %v79
    %82 = vmatprep.subr.mxu0 0.0
    %83 = vmatpush1.msra.mxu0 %v59
    %84 = vmatprep.subr.mxu0 0.0
    %85 = vmatpush1.msra.mxu0 %v60
    %86 = vmatprep.subr.mxu0 0.0
    %87 = vmatpush1.msra.mxu0 %v61
    %88 = vmatprep.subr.mxu0 0.0
    %89 = vmatpush1.msra.mxu0 %v62
    %90 = vmatprep.subr.mxu0 0.0
    %91 = vmatpush1.msra.mxu0 %v63
    %92 = vmatprep.subr.mxu0 0.0
    %93 = vmatpush1.msra.mxu0 %v64
    %94 = vmatprep.subr.mxu0 0.0
    %95 = vmatpush1.msra.mxu0 %v65
    %96 = vmatprep.subr.mxu0 0.0
    %97 = vmatpush1.msra.mxu0 %v66
    %98 = vmatprep.subr.mxu0 0.0
    %99 = vmatpush1.msra.mxu0 %v67
    %100 = vmatprep.subr.mxu0 0.0
    %101 = vmatpush1.msra.mxu0 %v68
    %102 = vmatprep.subr.mxu0 0.0
    %103 = vmatpush1.msra.mxu0 %v69
    %104 = vmatprep.subr.mxu0 0.0
    %105 = vmatpush1.msra.mxu0 %v70
    %106 = vmatprep.subr.mxu0 0.0
    %107 = vmatpush1.msra.mxu0 %v71
    %108 = vmatprep.subr.mxu0 0.0
    %109 = vmatpush1.msra.mxu0 %v72
    %110 = vmatprep.subr.mxu0 0.0
    %111 = vmatpush1.msra.mxu0 %v73
    %112 = vmatprep.subr.mxu0 0.0
    %113 = vmatpush1.msra.mxu0 %v74
    %114 = vmatprep.subr.mxu0 0.0
    %115 = vmatpush1.msra.mxu0 0.0
    %116 = vmatprep.subr.mxu0 0.0
    %117 = vmatpush1.msra.mxu0 0.0
    %118 = vmatprep.subr.mxu0 0.0
    %119 = vmatpush1.msra.mxu0 0.0
    %120 = vmatprep.subr.mxu0 0.0
    %121 = vmatpush1.msra.mxu0 0.0
    %122 = vmatprep.subr.mxu0 0.0
    %123 = vmatpush1.msra.mxu0 0.0
    %124 = vmatprep.subr.mxu0 0.0
    %125 = vmatpush1.msra.mxu0 0.0
    %126 = vmatprep.subr.mxu0 0.0
    %127 = vmatpush1.msra.mxu0 0.0
    %128 = vmatprep.subr.mxu0 0.0
    %129 = vmatpush1.msra.mxu0 0.0
    %130 = vmatprep.subr.mxu0 0.0
    %131 = vmatpush1.msra.mxu0 0.0
    %132 = vmatprep.subr.mxu0 0.0
    %133 = vmatpush1.msra.mxu0 0.0
    %134 = vmatprep.subr.mxu0 0.0
    %135 = vmatpush1.msra.mxu0 0.0
    %136 = vmatprep.subr.mxu0 0.0
    %137 = vmatpush1.msra.mxu0 0.0
    %138 = vmatprep.subr.mxu0 0.0
    %139 = vmatpush1.msra.mxu0 0.0
    %140 = vmatprep.subr.mxu0 0.0
    %141 = vmatpush1.msra.mxu0 0.0
    %142 = vmatprep.subr.mxu0 0.0
    %143 = vmatpush1.msra.mxu0 0.0
    %144 = vmatprep.subr.mxu0 0.0
    %145 = vmatpush1.msra.mxu0 0.0
    %146 = vmatprep.mubr.f32.mxu0 0.0
    %147 = vmatmul.mubr.f32.gmra.mrb[0].mxu0 %v27
    %v148 = vpop.f32.mrb[0].mxu0
    %v149 = vadd.f32 %v80, %v148
    %v150 = vpop.f32.mrb[0].mxu0
    %151 = vmatprep.mubr.f32.mxu0 0.0
    %152 = vmatmul.mubr.f32.gmra.mrb[0].mxu0 %v28
    %v153 = vpop.f32.mrb[0].mxu0
    %v154 = vadd.f32 %v80, %v153
    %v155 = vpop.f32.mrb[0].mxu0
    %156 = vmatprep.mubr.f32.mxu0 0.0
    %157 = vmatmul.mubr.f32.gmra.mrb[0].mxu0 %v29
    %v158 = vpop.f32.mrb[0].mxu0
    %v159 = vadd.f32 %v80, %v158
    %v160 = vpop.f32.mrb[0].mxu0
    %161 = vmatprep.mubr.f32.mxu0 0.0
    %162 = vmatmul.mubr.f32.gmra.mrb[0].mxu0 %v30
    %v163 = vpop.f32.mrb[0].mxu0
    %v164 = vadd.f32 %v80, %v163
    %v165 = vpop.f32.mrb[0].mxu0
    %166 = vmatprep.mubr.f32.mxu0 0.0
    %167 = vmatmul.mubr.f32.gmra.mrb[0].mxu0 %v31
    %v168 = vpop.f32.mrb[0].mxu0
    %v169 = vadd.f32 %v80, %v168
    %v170 = vpop.f32.mrb[0].mxu0
    %171 = vmatprep.mubr.f32.mxu0 0.0
    %172 = vmatmul.mubr.f32.gmra.mrb[0].mxu0 %v32
    %v173 = vpop.f32.mrb[0].mxu0
    %v174 = vadd.f32 %v80, %v173
    %v175 = vpop.f32.mrb[0].mxu0
    %176 = vmatprep.mubr.f32.mxu0 0.0
    %177 = vmatmul.mubr.f32.gmra.mrb[0].mxu0 %v33
    %v178 = vpop.f32.mrb[0].mxu0
    %v179 = vadd.f32 %v80, %v178
    %v180 = vpop.f32.mrb[0].mxu0
    %181 = vmatprep.mubr.f32.mxu0 0.0
    %182 = vmatmul.mubr.f32.gmra.mrb[0].mxu0 %v34
    %v183 = vpop.f32.mrb[0].mxu0
    %v184 = vadd.f32 %v80, %v183
    %v185 = vpop.f32.mrb[0].mxu0
    %186 = vmatprep.mubr.f32.mxu0 0.0
    %187 = vmatmul.mubr.f32.gmra.mrb[0].mxu0 %v35
    %v188 = vpop.f32.mrb[0].mxu0
    %v189 = vadd.f32 %v80, %v188
    %v190 = vpop.f32.mrb[0].mxu0
    %191 = vmatprep.mubr.f32.mxu0 0.0
    %192 = vmatmul.mubr.f32.gmra.mrb[0].mxu0 %v36
    %v193 = vpop.f32.mrb[0].mxu0
    %v194 = vadd.f32 %v80, %v193
    %v195 = vpop.f32.mrb[0].mxu0
    %196 = vmatprep.mubr.f32.mxu0 0.0
    %197 = vmatmul.mubr.f32.gmra.mrb[0].mxu0 %v37
    %v198 = vpop.f32.mrb[0].mxu0
    %v199 = vadd.f32 %v80, %v198
    %v200 = vpop.f32.mrb[0].mxu0
    %201 = vmatprep.mubr.f32.mxu0 0.0
    %202 = vmatmul.mubr.f32.gmra.mrb[0].mxu0 %v38
    %v203 = vpop.f32.mrb[0].mxu0
    %v204 = vadd.f32 %v80, %v203
    %v205 = vpop.f32.mrb[0].mxu0
    %206 = vmatprep.mubr.f32.mxu0 0.0
    %207 = vmatmul.mubr.f32.gmra.mrb[0].mxu0 %v39
    %v208 = vpop.f32.mrb[0].mxu0
    %v209 = vadd.f32 %v80, %v208
    %v210 = vpop.f32.mrb[0].mxu0
    %211 = vmatprep.mubr.f32.mxu0 0.0
    %212 = vmatmul.mubr.f32.gmra.mrb[0].mxu0 %v40
    %v213 = vpop.f32.mrb[0].mxu0
    %v214 = vadd.f32 %v80, %v213
    %v215 = vpop.f32.mrb[0].mxu0
    %216 = vmatprep.mubr.f32.mxu0 0.0
    %217 = vmatmul.mubr.f32.gmra.mrb[0].mxu0 %v41
    %v218 = vpop.f32.mrb[0].mxu0
    %v219 = vadd.f32 %v80, %v218
    %v220 = vpop.f32.mrb[0].mxu0
    %221 = vmatprep.mubr.f32.mxu0 0.0
    %222 = vmatmul.mubr.f32.gmra.mrb[0].mxu0 %v42
    %v223 = vpop.f32.mrb[0].mxu0
    %v224 = vadd.f32 %v80, %v223
    %v225 = vpop.f32.mrb[0].mxu0
    %226 = vmatprep.mubr.f32.mxu0 0.0
    %227 = vmatmul.mubr.f32.gmra.mrb[0].mxu0 %v43
    %v228 = vpop.f32.mrb[0].mxu0
    %v229 = vadd.f32 %v80, %v228
    %v230 = vpop.f32.mrb[0].mxu0
    %231 = vmatprep.mubr.f32.mxu0 0.0
    %232 = vmatmul.mubr.f32.gmra.mrb[0].mxu0 %v44
    %v233 = vpop.f32.mrb[0].mxu0
    %v234 = vadd.f32 %v80, %v233
    %v235 = vpop.f32.mrb[0].mxu0
    %236 = vmatprep.mubr.f32.mxu0 0.0
    %237 = vmatmul.mubr.f32.gmra.mrb[0].mxu0 %v45
    %v238 = vpop.f32.mrb[0].mxu0
    %v239 = vadd.f32 %v80, %v238
    %v240 = vpop.f32.mrb[0].mxu0
    %241 = vmatprep.mubr.f32.mxu0 0.0
    %242 = vmatmul.mubr.f32.gmra.mrb[0].mxu0 %v46
    %v243 = vpop.f32.mrb[0].mxu0
    %v244 = vadd.f32 %v80, %v243
    %v245 = vpop.f32.mrb[0].mxu0
    %246 = vmatprep.mubr.f32.mxu0 0.0
    %247 = vmatmul.mubr.f32.gmra.mrb[0].mxu0 %v47
    %v248 = vpop.f32.mrb[0].mxu0
    %v249 = vadd.f32 %v80, %v248
    %v250 = vpop.f32.mrb[0].mxu0
    %251 = vmatprep.mubr.f32.mxu0 0.0
    %252 = vmatmul.mubr.f32.gmra.mrb[0].mxu0 %v48
    %v253 = vpop.f32.mrb[0].mxu0
    %v254 = vadd.f32 %v80, %v253
    %v255 = vpop.f32.mrb[0].mxu0
    %256 = vmatprep.mubr.f32.mxu0 0.0
    %257 = vmatmul.mubr.f32.gmra.mrb[0].mxu0 %v49
    %v258 = vpop.f32.mrb[0].mxu0
    %v259 = vadd.f32 %v80, %v258
    %v260 = vpop.f32.mrb[0].mxu0
    %261 = vmatprep.mubr.f32.mxu0 0.0
    %262 = vmatmul.mubr.f32.gmra.mrb[0].mxu0 %v50
    %v263 = vpop.f32.mrb[0].mxu0
    %v264 = vadd.f32 %v80, %v263
    %v265 = vpop.f32.mrb[0].mxu0
    %266 = vmatprep.mubr.f32.mxu0 0.0
    %267 = vmatmul.mubr.f32.gmra.mrb[0].mxu0 %v51
    %v268 = vpop.f32.mrb[0].mxu0
    %v269 = vadd.f32 %v80, %v268
    %v270 = vpop.f32.mrb[0].mxu0
    %271 = vmatprep.mubr.f32.mxu0 0.0
    %272 = vmatmul.mubr.f32.gmra.mrb[0].mxu0 %v52
    %v273 = vpop.f32.mrb[0].mxu0
    %v274 = vadd.f32 %v80, %v273
    %v275 = vpop.f32.mrb[0].mxu0
    %276 = vmatprep.mubr.f32.mxu0 0.0
    %277 = vmatmul.mubr.f32.gmra.mrb[0].mxu0 %v53
    %v278 = vpop.f32.mrb[0].mxu0
    %v279 = vadd.f32 %v80, %v278
    %v280 = vpop.f32.mrb[0].mxu0
    %281 = vmatprep.mubr.f32.mxu0 0.0
    %282 = vmatmul.mubr.f32.gmra.mrb[0].mxu0 %v54
    %v283 = vpop.f32.mrb[0].mxu0
    %v284 = vadd.f32 %v80, %v283
    %v285 = vpop.f32.mrb[0].mxu0
    %286 = vmatprep.mubr.f32.mxu0 0.0
    %287 = vmatmul.mubr.f32.gmra.mrb[0].mxu0 %v55
    %v288 = vpop.f32.mrb[0].mxu0
    %v289 = vadd.f32 %v80, %v288
    %v290 = vpop.f32.mrb[0].mxu0
    %291 = vmatprep.mubr.f32.mxu0 0.0
    %292 = vmatmul.mubr.f32.gmra.mrb[0].mxu0 %v56
    %v293 = vpop.f32.mrb[0].mxu0
    %v294 = vadd.f32 %v80, %v293
    %v295 = vpop.f32.mrb[0].mxu0
    %296 = vmatprep.mubr.f32.mxu0 0.0
    %297 = vmatmul.mubr.f32.gmra.mrb[0].mxu0 %v57
    %v298 = vpop.f32.mrb[0].mxu0
    %v299 = vadd.f32 %v80, %v298
    %v300 = vpop.f32.mrb[0].mxu0
    %301 = vmatprep.mubr.f32.mxu0 0.0
    %302 = vmatmul.mubr.f32.gmra.mrb[0].mxu0 %v58
    %v303 = vpop.f32.mrb[0].mxu0
    %v304 = vadd.f32 %v80, %v303
    %v305 = vpop.f32.mrb[0].mxu0
    %306 = vdwg.mxu0
    %vm307 = vcmp.gt.f32.partialorder %v149, 0.0
    %vm308 = vcmp.gt.f32.partialorder %v154, 0.0
    %vm309 = vcmp.gt.f32.partialorder %v159, 0.0
    %vm310 = vcmp.gt.f32.partialorder %v164, 0.0
    %vm311 = vcmp.gt.f32.partialorder %v169, 0.0
    %vm312 = vcmp.gt.f32.partialorder %v174, 0.0
    %vm313 = vcmp.gt.f32.partialorder %v179, 0.0
    %vm314 = vcmp.gt.f32.partialorder %v184, 0.0
    %vm315 = vcmp.gt.f32.partialorder %v189, 0.0
    %vm316 = vcmp.gt.f32.partialorder %v194, 0.0
    %vm317 = vcmp.gt.f32.partialorder %v199, 0.0
    %vm318 = vcmp.gt.f32.partialorder %v204, 0.0
    %vm319 = vcmp.gt.f32.partialorder %v209, 0.0
    %vm320 = vcmp.gt.f32.partialorder %v214, 0.0
    %vm321 = vcmp.gt.f32.partialorder %v219, 0.0
    %vm322 = vcmp.gt.f32.partialorder %v224, 0.0
    %vm323 = vcmp.gt.f32.partialorder %v229, 0.0
    %vm324 = vcmp.gt.f32.partialorder %v234, 0.0
    %vm325 = vcmp.gt.f32.partialorder %v239, 0.0
    %vm326 = vcmp.gt.f32.partialorder %v244, 0.0
    %vm327 = vcmp.gt.f32.partialorder %v249, 0.0
    %vm328 = vcmp.gt.f32.partialorder %v254, 0.0
    %vm329 = vcmp.gt.f32.partialorder %v259, 0.0
    %vm330 = vcmp.gt.f32.partialorder %v264, 0.0
    %vm331 = vcmp.gt.f32.partialorder %v269, 0.0
    %vm332 = vcmp.gt.f32.partialorder %v274, 0.0
    %vm333 = vcmp.gt.f32.partialorder %v279, 0.0
    %vm334 = vcmp.gt.f32.partialorder %v284, 0.0
    %vm335 = vcmp.gt.f32.partialorder %v289, 0.0
    %vm336 = vcmp.gt.f32.partialorder %v294, 0.0
    %vm337 = vcmp.gt.f32.partialorder %v299, 0.0
    %vm338 = vcmp.gt.f32.partialorder %v304, 0.0
    %v339 = vmul.f32 %v149, 0.2
    %v340 = vmul.f32 %v154, 0.2
    %v341 = vmul.f32 %v159, 0.2
    %v342 = vmul.f32 %v164, 0.2
    %v343 = vmul.f32 %v169, 0.2
    %v344 = vmul.f32 %v174, 0.2
    %v345 = vmul.f32 %v179, 0.2
    %v346 = vmul.f32 %v184, 0.2
    %v347 = vmul.f32 %v189, 0.2
    %v348 = vmul.f32 %v194, 0.2
    %v349 = vmul.f32 %v199, 0.2
    %v350 = vmul.f32 %v204, 0.2
    %v351 = vmul.f32 %v209, 0.2
    %v352 = vmul.f32 %v214, 0.2
    %v353 = vmul.f32 %v219, 0.2
    %v354 = vmul.f32 %v224, 0.2
    %v355 = vmul.f32 %v229, 0.2
    %v356 = vmul.f32 %v234, 0.2
    %v357 = vmul.f32 %v239, 0.2
    %v358 = vmul.f32 %v244, 0.2
    %v359 = vmul.f32 %v249, 0.2
    %v360 = vmul.f32 %v254, 0.2
    %v361 = vmul.f32 %v259, 0.2
    %v362 = vmul.f32 %v264, 0.2
    %v363 = vmul.f32 %v269, 0.2
    %v364 = vmul.f32 %v274, 0.2
    %v365 = vmul.f32 %v279, 0.2
    %v366 = vmul.f32 %v284, 0.2
    %v367 = vmul.f32 %v289, 0.2
    %v368 = vmul.f32 %v294, 0.2
    %v369 = vmul.f32 %v299, 0.2
    %v370 = vmul.f32 %v304, 0.2
    %v371 = vsel %vm307, %v149, %v339
    %v372 = vsel %vm308, %v154, %v340
    %v373 = vsel %vm309, %v159, %v341
    %v374 = vsel %vm310, %v164, %v342
    %v375 = vsel %vm311, %v169, %v343
    %v376 = vsel %vm312, %v174, %v344
    %v377 = vsel %vm313, %v179, %v345
    %v378 = vsel %vm314, %v184, %v346
    %v379 = vsel %vm315, %v189, %v347
    %v380 = vsel %vm316, %v194, %v348
    %v381 = vsel %vm317, %v199, %v349
    %v382 = vsel %vm318, %v204, %v350
    %v383 = vsel %vm319, %v209, %v351
    %v384 = vsel %vm320, %v214, %v352
    %v385 = vsel %vm321, %v219, %v353
    %v386 = vsel %vm322, %v224, %v354
    %v387 = vsel %vm323, %v229, %v355
    %v388 = vsel %vm324, %v234, %v356
    %v389 = vsel %vm325, %v239, %v357
    %v390 = vsel %vm326, %v244, %v358
    %v391 = vsel %vm327, %v249, %v359
    %v392 = vsel %vm328, %v254, %v360
    %v393 = vsel %vm329, %v259, %v361
    %v394 = vsel %vm330, %v264, %v362
    %v395 = vsel %vm331, %v269, %v363
    %v396 = vsel %vm332, %v274, %v364
    %v397 = vsel %vm333, %v279, %v365
    %v398 = vsel %vm334, %v284, %v366
    %v399 = vsel %vm335, %v289, %v367
    %v400 = vsel %vm336, %v294, %v368
    %v401 = vsel %vm337, %v299, %v369
    %v402 = vsel %vm338, %v304, %v370
    %v403 = vld [vmem:[%s3] sm:$0xff]
    %v404 = vld [vmem:[%s3 + $0x8] sm:$0xff]
    %v405 = vld [vmem:[%s3 + $0x10] sm:$0xff]
    %v406 = vld [vmem:[%s3 + $0x18] sm:$0xff]
    %v407 = vld [vmem:[%s3 + $0x20] sm:$0xff]
    %v408 = vld [vmem:[%s3 + $0x28] sm:$0xff]
    %v409 = vld [vmem:[%s3 + $0x30] sm:$0xff]
    %v410 = vld [vmem:[%s3 + $0x38] sm:$0xff]
    %v411 = vld [vmem:[%s3 + $0x40] sm:$0xff]
    %v412 = vld [vmem:[%s3 + $0x48] sm:$0xff]
    %v413 = vld [vmem:[%s3 + $0x50] sm:$0xff]
    %v414 = vld [vmem:[%s3 + $0x58] sm:$0xff]
    %v415 = vld [vmem:[%s3 + $0x60] sm:$0xff]
    %v416 = vld [vmem:[%s3 + $0x68] sm:$0xff]
    %v417 = vld [vmem:[%s3 + $0x70] sm:$0xff]
    %v418 = vld [vmem:[%s3 + $0x78] sm:$0xff]
    %v419 = vld [vmem:[%s4] sm:$0x1]
    %v421 = vlaneseq
    %v422 = vshrl.u32 %v421, 7
    %v423 = vsub.s32 0, %v422
    %v424 = vrot.slane %v419, %v423
    %426 = vmatprep.subr.mxu0 0.0
    %427 = vmatpush1.msra.mxu0 %v403
    %428 = vmatprep.subr.mxu0 0.0
    %429 = vmatpush1.msra.mxu0 %v404
    %430 = vmatprep.subr.mxu0 0.0
    %431 = vmatpush1.msra.mxu0 %v405
    %432 = vmatprep.subr.mxu0 0.0
    %433 = vmatpush1.msra.mxu0 %v406
    %434 = vmatprep.subr.mxu0 0.0
    %435 = vmatpush1.msra.mxu0 %v407
    %436 = vmatprep.subr.mxu0 0.0
    %437 = vmatpush1.msra.mxu0 %v408
    %438 = vmatprep.subr.mxu0 0.0
    %439 = vmatpush1.msra.mxu0 %v409
    %440 = vmatprep.subr.mxu0 0.0
    %441 = vmatpush1.msra.mxu0 %v410
    %442 = vmatprep.subr.mxu0 0.0
    %443 = vmatpush1.msra.mxu0 %v411
    %444 = vmatprep.subr.mxu0 0.0
    %445 = vmatpush1.msra.mxu0 %v412
    %446 = vmatprep.subr.mxu0 0.0
    %447 = vmatpush1.msra.mxu0 %v413
    %448 = vmatprep.subr.mxu0 0.0
    %449 = vmatpush1.msra.mxu0 %v414
    %450 = vmatprep.subr.mxu0 0.0
    %451 = vmatpush1.msra.mxu0 %v415
    %452 = vmatprep.subr.mxu0 0.0
    %453 = vmatpush1.msra.mxu0 %v416
    %454 = vmatprep.subr.mxu0 0.0
    %455 = vmatpush1.msra.mxu0 %v417
    %456 = vmatprep.subr.mxu0 0.0
    %457 = vmatpush1.msra.mxu0 %v418
    %458 = vmatprep.subr.mxu0 0.0
    %459 = vmatpush1.msra.mxu0 0.0
    %460 = vmatprep.subr.mxu0 0.0
    %461 = vmatpush1.msra.mxu0 0.0
    %462 = vmatprep.subr.mxu0 0.0
    %463 = vmatpush1.msra.mxu0 0.0
    %464 = vmatprep.subr.mxu0 0.0
    %465 = vmatpush1.msra.mxu0 0.0
    %466 = vmatprep.subr.mxu0 0.0
    %467 = vmatpush1.msra.mxu0 0.0
    %468 = vmatprep.subr.mxu0 0.0
    %469 = vmatpush1.msra.mxu0 0.0
    %470 = vmatprep.subr.mxu0 0.0
    %471 = vmatpush1.msra.mxu0 0.0
    %472 = vmatprep.subr.mxu0 0.0
    %473 = vmatpush1.msra.mxu0 0.0
    %474 = vmatprep.subr.mxu0 0.0
    %475 = vmatpush1.msra.mxu0 0.0
    %476 = vmatprep.subr.mxu0 0.0
    %477 = vmatpush1.msra.mxu0 0.0
    %478 = vmatprep.subr.mxu0 0.0
    %479 = vmatpush1.msra.mxu0 0.0
    %480 = vmatprep.subr.mxu0 0.0
    %481 = vmatpush1.msra.mxu0 0.0
    %482 = vmatprep.subr.mxu0 0.0
    %483 = vmatpush1.msra.mxu0 0.0
    %484 = vmatprep.subr.mxu0 0.0
    %485 = vmatpush1.msra.mxu0 0.0
    %486 = vmatprep.subr.mxu0 0.0
    %487 = vmatpush1.msra.mxu0 0.0
    %488 = vmatprep.subr.mxu0 0.0
    %489 = vmatpush1.msra.mxu0 0.0
    %490 = vmatprep.mubr.f32.mxu0 0.0
    %491 = vmatmul.mubr.f32.gmra.mrb[0].mxu0 %v371
    %v492 = vpop.f32.mrb[0].mxu0
    %v493 = vadd.f32 %v424, %v492
    %v494 = vpop.f32.mrb[0].mxu0
    %495 = vmatprep.mubr.f32.mxu0 0.0
    %496 = vmatmul.mubr.f32.gmra.mrb[0].mxu0 %v372
    %v497 = vpop.f32.mrb[0].mxu0
    %v498 = vadd.f32 %v424, %v497
    %v499 = vpop.f32.mrb[0].mxu0
    %500 = vmatprep.mubr.f32.mxu0 0.0
    %501 = vmatmul.mubr.f32.gmra.mrb[0].mxu0 %v373
    %v502 = vpop.f32.mrb[0].mxu0
    %v503 = vadd.f32 %v424, %v502
    %v504 = vpop.f32.mrb[0].mxu0
    %505 = vmatprep.mubr.f32.mxu0 0.0
    %506 = vmatmul.mubr.f32.gmra.mrb[0].mxu0 %v374
    %v507 = vpop.f32.mrb[0].mxu0
    %v508 = vadd.f32 %v424, %v507
    %v509 = vpop.f32.mrb[0].mxu0
    %510 = vmatprep.mubr.f32.mxu0 0.0
    %511 = vmatmul.mubr.f32.gmra.mrb[0].mxu0 %v375
    %v512 = vpop.f32.mrb[0].mxu0
    %v513 = vadd.f32 %v424, %v512
    %v514 = vpop.f32.mrb[0].mxu0
    %515 = vmatprep.mubr.f32.mxu0 0.0
    %516 = vmatmul.mubr.f32.gmra.mrb[0].mxu0 %v376
    %v517 = vpop.f32.mrb[0].mxu0
    %v518 = vadd.f32 %v424, %v517
    %v519 = vpop.f32.mrb[0].mxu0
    %520 = vmatprep.mubr.f32.mxu0 0.0
    %521 = vmatmul.mubr.f32.gmra.mrb[0].mxu0 %v377
    %v522 = vpop.f32.mrb[0].mxu0
    %v523 = vadd.f32 %v424, %v522
    %v524 = vpop.f32.mrb[0].mxu0
    %525 = vmatprep.mubr.f32.mxu0 0.0
    %526 = vmatmul.mubr.f32.gmra.mrb[0].mxu0 %v378
    %v527 = vpop.f32.mrb[0].mxu0
    %v528 = vadd.f32 %v424, %v527
    %v529 = vpop.f32.mrb[0].mxu0
    %530 = vmatprep.mubr.f32.mxu0 0.0
    %531 = vmatmul.mubr.f32.gmra.mrb[0].mxu0 %v379
    %v532 = vpop.f32.mrb[0].mxu0
    %v533 = vadd.f32 %v424, %v532
    %v534 = vpop.f32.mrb[0].mxu0
    %535 = vmatprep.mubr.f32.mxu0 0.0
    %536 = vmatmul.mubr.f32.gmra.mrb[0].mxu0 %v380
    %v537 = vpop.f32.mrb[0].mxu0
    %v538 = vadd.f32 %v424, %v537
    %v539 = vpop.f32.mrb[0].mxu0
    %540 = vmatprep.mubr.f32.mxu0 0.0
    %541 = vmatmul.mubr.f32.gmra.mrb[0].mxu0 %v381
    %v542 = vpop.f32.mrb[0].mxu0
    %v543 = vadd.f32 %v424, %v542
    %v544 = vpop.f32.mrb[0].mxu0
    %545 = vmatprep.mubr.f32.mxu0 0.0
    %546 = vmatmul.mubr.f32.gmra.mrb[0].mxu0 %v382
    %v547 = vpop.f32.mrb[0].mxu0
    %v548 = vadd.f32 %v424, %v547
    %v549 = vpop.f32.mrb[0].mxu0
    %550 = vmatprep.mubr.f32.mxu0 0.0
    %551 = vmatmul.mubr.f32.gmra.mrb[0].mxu0 %v383
    %v552 = vpop.f32.mrb[0].mxu0
    %v553 = vadd.f32 %v424, %v552
    %v554 = vpop.f32.mrb[0].mxu0
    %555 = vmatprep.mubr.f32.mxu0 0.0
    %556 = vmatmul.mubr.f32.gmra.mrb[0].mxu0 %v384
    %v557 = vpop.f32.mrb[0].mxu0
    %v558 = vadd.f32 %v424, %v557
    %v559 = vpop.f32.mrb[0].mxu0
    %560 = vmatprep.mubr.f32.mxu0 0.0
    %561 = vmatmul.mubr.f32.gmra.mrb[0].mxu0 %v385
    %v562 = vpop.f32.mrb[0].mxu0
    %v563 = vadd.f32 %v424, %v562
    %v564 = vpop.f32.mrb[0].mxu0
    %565 = vmatprep.mubr.f32.mxu0 0.0
    %566 = vmatmul.mubr.f32.gmra.mrb[0].mxu0 %v386
    %v567 = vpop.f32.mrb[0].mxu0
    %v568 = vadd.f32 %v424, %v567
    %v569 = vpop.f32.mrb[0].mxu0
    %570 = vmatprep.mubr.f32.mxu0 0.0
    %571 = vmatmul.mubr.f32.gmra.mrb[0].mxu0 %v387
    %v572 = vpop.f32.mrb[0].mxu0
    %v573 = vadd.f32 %v424, %v572
    %v574 = vpop.f32.mrb[0].mxu0
    %575 = vmatprep.mubr.f32.mxu0 0.0
    %576 = vmatmul.mubr.f32.gmra.mrb[0].mxu0 %v388
    %v577 = vpop.f32.mrb[0].mxu0
    %v578 = vadd.f32 %v424, %v577
    %v579 = vpop.f32.mrb[0].mxu0
    %580 = vmatprep.mubr.f32.mxu0 0.0
    %581 = vmatmul.mubr.f32.gmra.mrb[0].mxu0 %v389
    %v582 = vpop.f32.mrb[0].mxu0
    %v583 = vadd.f32 %v424, %v582
    %v584 = vpop.f32.mrb[0].mxu0
    %585 = vmatprep.mubr.f32.mxu0 0.0
    %586 = vmatmul.mubr.f32.gmra.mrb[0].mxu0 %v390
    %v587 = vpop.f32.mrb[0].mxu0
    %v588 = vadd.f32 %v424, %v587
    %v589 = vpop.f32.mrb[0].mxu0
    %590 = vmatprep.mubr.f32.mxu0 0.0
    %591 = vmatmul.mubr.f32.gmra.mrb[0].mxu0 %v391
    %v592 = vpop.f32.mrb[0].mxu0
    %v593 = vadd.f32 %v424, %v592
    %v594 = vpop.f32.mrb[0].mxu0
    %595 = vmatprep.mubr.f32.mxu0 0.0
    %596 = vmatmul.mubr.f32.gmra.mrb[0].mxu0 %v392
    %v597 = vpop.f32.mrb[0].mxu0
    %v598 = vadd.f32 %v424, %v597
    %v599 = vpop.f32.mrb[0].mxu0
    %600 = vmatprep.mubr.f32.mxu0 0.0
    %601 = vmatmul.mubr.f32.gmra.mrb[0].mxu0 %v393
    %v602 = vpop.f32.mrb[0].mxu0
    %v603 = vadd.f32 %v424, %v602
    %v604 = vpop.f32.mrb[0].mxu0
    %605 = vmatprep.mubr.f32.mxu0 0.0
    %606 = vmatmul.mubr.f32.gmra.mrb[0].mxu0 %v394
    %v607 = vpop.f32.mrb[0].mxu0
    %v608 = vadd.f32 %v424, %v607
    %v609 = vpop.f32.mrb[0].mxu0
    %610 = vmatprep.mubr.f32.mxu0 0.0
    %611 = vmatmul.mubr.f32.gmra.mrb[0].mxu0 %v395
    %v612 = vpop.f32.mrb[0].mxu0
    %v613 = vadd.f32 %v424, %v612
    %v614 = vpop.f32.mrb[0].mxu0
    %615 = vmatprep.mubr.f32.mxu0 0.0
    %616 = vmatmul.mubr.f32.gmra.mrb[0].mxu0 %v396
    %v617 = vpop.f32.mrb[0].mxu0
    %v618 = vadd.f32 %v424, %v617
    %v619 = vpop.f32.mrb[0].mxu0
    %620 = vmatprep.mubr.f32.mxu0 0.0
    %621 = vmatmul.mubr.f32.gmra.mrb[0].mxu0 %v397
    %v622 = vpop.f32.mrb[0].mxu0
    %v623 = vadd.f32 %v424, %v622
    %v624 = vpop.f32.mrb[0].mxu0
    %625 = vmatprep.mubr.f32.mxu0 0.0
    %626 = vmatmul.mubr.f32.gmra.mrb[0].mxu0 %v398
    %v627 = vpop.f32.mrb[0].mxu0
    %v628 = vadd.f32 %v424, %v627
    %v629 = vpop.f32.mrb[0].mxu0
    %630 = vmatprep.mubr.f32.mxu0 0.0
    %631 = vmatmul.mubr.f32.gmra.mrb[0].mxu0 %v399
    %v632 = vpop.f32.mrb[0].mxu0
    %v633 = vadd.f32 %v424, %v632
    %v634 = vpop.f32.mrb[0].mxu0
    %635 = vmatprep.mubr.f32.mxu0 0.0
    %636 = vmatmul.mubr.f32.gmra.mrb[0].mxu0 %v400
    %v637 = vpop.f32.mrb[0].mxu0
    %v638 = vadd.f32 %v424, %v637
    %v639 = vpop.f32.mrb[0].mxu0
    %640 = vmatprep.mubr.f32.mxu0 0.0
    %641 = vmatmul.mubr.f32.gmra.mrb[0].mxu0 %v401
    %v642 = vpop.f32.mrb[0].mxu0
    %v643 = vadd.f32 %v424, %v642
    %v644 = vpop.f32.mrb[0].mxu0
    %645 = vmatprep.mubr.f32.mxu0 0.0
    %646 = vmatmul.mubr.f32.gmra.mrb[0].mxu0 %v402
    %v647 = vpop.f32.mrb[0].mxu0
    %v648 = vadd.f32 %v424, %v647
    %v649 = vpop.f32.mrb[0].mxu0
    %650 = vdwg.mxu0
    %vm651 = vcmp.gt.f32.partialorder %v493, 0.0
    %vm652 = vcmp.gt.f32.partialorder %v498, 0.0
    %vm653 = vcmp.gt.f32.partialorder %v503, 0.0
    %vm654 = vcmp.gt.f32.partialorder %v508, 0.0
    %vm655 = vcmp.gt.f32.partialorder %v513, 0.0
    %vm656 = vcmp.gt.f32.partialorder %v518, 0.0
    %vm657 = vcmp.gt.f32.partialorder %v523, 0.0
    %vm658 = vcmp.gt.f32.partialorder %v528, 0.0
    %vm659 = vcmp.gt.f32.partialorder %v533, 0.0
    %vm660 = vcmp.gt.f32.partialorder %v538, 0.0
    %vm661 = vcmp.gt.f32.partialorder %v543, 0.0
    %vm662 = vcmp.gt.f32.partialorder %v548, 0.0
    %vm663 = vcmp.gt.f32.partialorder %v553, 0.0
    %vm664 = vcmp.gt.f32.partialorder %v558, 0.0
    %vm665 = vcmp.gt.f32.partialorder %v563, 0.0
    %vm666 = vcmp.gt.f32.partialorder %v568, 0.0
    %vm667 = vcmp.gt.f32.partialorder %v573, 0.0
    %vm668 = vcmp.gt.f32.partialorder %v578, 0.0
    %vm669 = vcmp.gt.f32.partialorder %v583, 0.0
    %vm670 = vcmp.gt.f32.partialorder %v588, 0.0
    %vm671 = vcmp.gt.f32.partialorder %v593, 0.0
    %vm672 = vcmp.gt.f32.partialorder %v598, 0.0
    %vm673 = vcmp.gt.f32.partialorder %v603, 0.0
    %vm674 = vcmp.gt.f32.partialorder %v608, 0.0
    %vm675 = vcmp.gt.f32.partialorder %v613, 0.0
    %vm676 = vcmp.gt.f32.partialorder %v618, 0.0
    %vm677 = vcmp.gt.f32.partialorder %v623, 0.0
    %vm678 = vcmp.gt.f32.partialorder %v628, 0.0
    %vm679 = vcmp.gt.f32.partialorder %v633, 0.0
    %vm680 = vcmp.gt.f32.partialorder %v638, 0.0
    %vm681 = vcmp.gt.f32.partialorder %v643, 0.0
    %vm682 = vcmp.gt.f32.partialorder %v648, 0.0
    %v683 = vmul.f32 %v493, 0.2
    %v684 = vmul.f32 %v498, 0.2
    %v685 = vmul.f32 %v503, 0.2
    %v686 = vmul.f32 %v508, 0.2
    %v687 = vmul.f32 %v513, 0.2
    %v688 = vmul.f32 %v518, 0.2
    %v689 = vmul.f32 %v523, 0.2
    %v690 = vmul.f32 %v528, 0.2
    %v691 = vmul.f32 %v533, 0.2
    %v692 = vmul.f32 %v538, 0.2
    %v693 = vmul.f32 %v543, 0.2
    %v694 = vmul.f32 %v548, 0.2
    %v695 = vmul.f32 %v553, 0.2
    %v696 = vmul.f32 %v558, 0.2
    %v697 = vmul.f32 %v563, 0.2
    %v698 = vmul.f32 %v568, 0.2
    %v699 = vmul.f32 %v573, 0.2
    %v700 = vmul.f32 %v578, 0.2
    %v701 = vmul.f32 %v583, 0.2
    %v702 = vmul.f32 %v588, 0.2
    %v703 = vmul.f32 %v593, 0.2
    %v704 = vmul.f32 %v598, 0.2
    %v705 = vmul.f32 %v603, 0.2
    %v706 = vmul.f32 %v608, 0.2
    %v707 = vmul.f32 %v613, 0.2
    %v708 = vmul.f32 %v618, 0.2
    %v709 = vmul.f32 %v623, 0.2
    %v710 = vmul.f32 %v628, 0.2
    %v711 = vmul.f32 %v633, 0.2
    %v712 = vmul.f32 %v638, 0.2
    %v713 = vmul.f32 %v643, 0.2
    %v714 = vmul.f32 %v648, 0.2
    %v715 = vsel %vm651, %v493, %v683
    %v716 = vsel %vm652, %v498, %v684
    %v717 = vsel %vm653, %v503, %v685
    %v718 = vsel %vm654, %v508, %v686
    %v719 = vsel %vm655, %v513, %v687
    %v720 = vsel %vm656, %v518, %v688
    %v721 = vsel %vm657, %v523, %v689
    %v722 = vsel %vm658, %v528, %v690
    %v723 = vsel %vm659, %v533, %v691
    %v724 = vsel %vm660, %v538, %v692
    %v725 = vsel %vm661, %v543, %v693
    %v726 = vsel %vm662, %v548, %v694
    %v727 = vsel %vm663, %v553, %v695
    %v728 = vsel %vm664, %v558, %v696
    %v729 = vsel %vm665, %v563, %v697
    %v730 = vsel %vm666, %v568, %v698
    %v731 = vsel %vm667, %v573, %v699
    %v732 = vsel %vm668, %v578, %v700
    %v733 = vsel %vm669, %v583, %v701
    %v734 = vsel %vm670, %v588, %v702
    %v735 = vsel %vm671, %v593, %v703
    %v736 = vsel %vm672, %v598, %v704
    %v737 = vsel %vm673, %v603, %v705
    %v738 = vsel %vm674, %v608, %v706
    %v739 = vsel %vm675, %v613, %v707
    %v740 = vsel %vm676, %v618, %v708
    %v741 = vsel %vm677, %v623, %v709
    %v742 = vsel %vm678, %v628, %v710
    %v743 = vsel %vm679, %v633, %v711
    %v744 = vsel %vm680, %v638, %v712
    %v745 = vsel %vm681, %v643, %v713
    %v746 = vsel %vm682, %v648, %v714
    %v747 = vld [vmem:[%s5] sm:$0xff]
    %v748 = vld [vmem:[%s5 + $0x8] sm:$0xff]
    %v749 = vld [vmem:[%s5 + $0x10] sm:$0xff]
    %v750 = vld [vmem:[%s5 + $0x18] sm:$0xff]
    %v751 = vld [vmem:[%s5 + $0x20] sm:$0xff]
    %v752 = vld [vmem:[%s5 + $0x28] sm:$0xff]
    %v753 = vld [vmem:[%s5 + $0x30] sm:$0xff]
    %v754 = vld [vmem:[%s5 + $0x38] sm:$0xff]
    %v755 = vld [vmem:[%s5 + $0x40] sm:$0xff]
    %v756 = vld [vmem:[%s5 + $0x48] sm:$0xff]
    %v757 = vld [vmem:[%s5 + $0x50] sm:$0xff]
    %v758 = vld [vmem:[%s5 + $0x58] sm:$0xff]
    %v759 = vld [vmem:[%s5 + $0x60] sm:$0xff]
    %v760 = vld [vmem:[%s5 + $0x68] sm:$0xff]
    %v761 = vld [vmem:[%s5 + $0x70] sm:$0xff]
    %v762 = vld [vmem:[%s5 + $0x78] sm:$0xff]
    %v763 = vld [vmem:[%s6] sm:$0x1]
    %v765 = vlaneseq
    %v766 = vshrl.u32 %v765, 7
    %v767 = vsub.s32 0, %v766
    %v768 = vrot.slane %v763, %v767
    %770 = vmatprep.subr.mxu0 0.0
    %771 = vmatpush1.msra.mxu0 %v747
    %772 = vmatprep.subr.mxu0 0.0
    %773 = vmatpush1.msra.mxu0 %v748
    %774 = vmatprep.subr.mxu0 0.0
    %775 = vmatpush1.msra.mxu0 %v749
    %776 = vmatprep.subr.mxu0 0.0
    %777 = vmatpush1.msra.mxu0 %v750
    %778 = vmatprep.subr.mxu0 0.0
    %779 = vmatpush1.msra.mxu0 %v751
    %780 = vmatprep.subr.mxu0 0.0
    %781 = vmatpush1.msra.mxu0 %v752
    %782 = vmatprep.subr.mxu0 0.0
    %783 = vmatpush1.msra.mxu0 %v753
    %784 = vmatprep.subr.mxu0 0.0
    %785 = vmatpush1.msra.mxu0 %v754
    %786 = vmatprep.subr.mxu0 0.0
    %787 = vmatpush1.msra.mxu0 %v755
    %788 = vmatprep.subr.mxu0 0.0
    %789 = vmatpush1.msra.mxu0 %v756
    %790 = vmatprep.subr.mxu0 0.0
    %791 = vmatpush1.msra.mxu0 %v757
    %792 = vmatprep.subr.mxu0 0.0
    %793 = vmatpush1.msra.mxu0 %v758
    %794 = vmatprep.subr.mxu0 0.0
    %795 = vmatpush1.msra.mxu0 %v759
    %796 = vmatprep.subr.mxu0 0.0
    %797 = vmatpush1.msra.mxu0 %v760
    %798 = vmatprep.subr.mxu0 0.0
    %799 = vmatpush1.msra.mxu0 %v761
    %800 = vmatprep.subr.mxu0 0.0
    %801 = vmatpush1.msra.mxu0 %v762
    %802 = vmatprep.subr.mxu0 0.0
    %803 = vmatpush1.msra.mxu0 0.0
    %804 = vmatprep.subr.mxu0 0.0
    %805 = vmatpush1.msra.mxu0 0.0
    %806 = vmatprep.subr.mxu0 0.0
    %807 = vmatpush1.msra.mxu0 0.0
    %808 = vmatprep.subr.mxu0 0.0
    %809 = vmatpush1.msra.mxu0 0.0
    %810 = vmatprep.subr.mxu0 0.0
    %811 = vmatpush1.msra.mxu0 0.0
    %812 = vmatprep.subr.mxu0 0.0
    %813 = vmatpush1.msra.mxu0 0.0
    %814 = vmatprep.subr.mxu0 0.0
    %815 = vmatpush1.msra.mxu0 0.0
    %816 = vmatprep.subr.mxu0 0.0
    %817 = vmatpush1.msra.mxu0 0.0
    %818 = vmatprep.subr.mxu0 0.0
    %819 = vmatpush1.msra.mxu0 0.0
    %820 = vmatprep.subr.mxu0 0.0
    %821 = vmatpush1.msra.mxu0 0.0
    %822 = vmatprep.subr.mxu0 0.0
    %823 = vmatpush1.msra.mxu0 0.0
    %824 = vmatprep.subr.mxu0 0.0
    %825 = vmatpush1.msra.mxu0 0.0
    %826 = vmatprep.subr.mxu0 0.0
    %827 = vmatpush1.msra.mxu0 0.0
    %828 = vmatprep.subr.mxu0 0.0
    %829 = vmatpush1.msra.mxu0 0.0
    %830 = vmatprep.subr.mxu0 0.0
    %831 = vmatpush1.msra.mxu0 0.0
    %832 = vmatprep.subr.mxu0 0.0
    %833 = vmatpush1.msra.mxu0 0.0
    %834 = vmatprep.mubr.f32.mxu0 0.0
    %835 = vmatmul.mubr.f32.gmra.mrb[0].mxu0 %v715
    %v836 = vpop.f32.mrb[0].mxu0
    %v837 = vadd.f32 %v768, %v836
    %v838 = vpop.f32.mrb[0].mxu0
    %839 = vmatprep.mubr.f32.mxu0 0.0
    %840 = vmatmul.mubr.f32.gmra.mrb[0].mxu0 %v716
    %v841 = vpop.f32.mrb[0].mxu0
    %v842 = vadd.f32 %v768, %v841
    %v843 = vpop.f32.mrb[0].mxu0
    %844 = vmatprep.mubr.f32.mxu0 0.0
    %845 = vmatmul.mubr.f32.gmra.mrb[0].mxu0 %v717
    %v846 = vpop.f32.mrb[0].mxu0
    %v847 = vadd.f32 %v768, %v846
    %v848 = vpop.f32.mrb[0].mxu0
    %849 = vmatprep.mubr.f32.mxu0 0.0
    %850 = vmatmul.mubr.f32.gmra.mrb[0].mxu0 %v718
    %v851 = vpop.f32.mrb[0].mxu0
    %v852 = vadd.f32 %v768, %v851
    %v853 = vpop.f32.mrb[0].mxu0
    %854 = vmatprep.mubr.f32.mxu0 0.0
    %855 = vmatmul.mubr.f32.gmra.mrb[0].mxu0 %v719
    %v856 = vpop.f32.mrb[0].mxu0
    %v857 = vadd.f32 %v768, %v856
    %v858 = vpop.f32.mrb[0].mxu0
    %859 = vmatprep.mubr.f32.mxu0 0.0
    %860 = vmatmul.mubr.f32.gmra.mrb[0].mxu0 %v720
    %v861 = vpop.f32.mrb[0].mxu0
    %v862 = vadd.f32 %v768, %v861
    %v863 = vpop.f32.mrb[0].mxu0
    %864 = vmatprep.mubr.f32.mxu0 0.0
    %865 = vmatmul.mubr.f32.gmra.mrb[0].mxu0 %v721
    %v866 = vpop.f32.mrb[0].mxu0
    %v867 = vadd.f32 %v768, %v866
    %v868 = vpop.f32.mrb[0].mxu0
    %869 = vmatprep.mubr.f32.mxu0 0.0
    %870 = vmatmul.mubr.f32.gmra.mrb[0].mxu0 %v722
    %v871 = vpop.f32.mrb[0].mxu0
    %v872 = vadd.f32 %v768, %v871
    %v873 = vpop.f32.mrb[0].mxu0
    %874 = vmatprep.mubr.f32.mxu0 0.0
    %875 = vmatmul.mubr.f32.gmra.mrb[0].mxu0 %v723
    %v876 = vpop.f32.mrb[0].mxu0
    %v877 = vadd.f32 %v768, %v876
    %v878 = vpop.f32.mrb[0].mxu0
    %879 = vmatprep.mubr.f32.mxu0 0.0
    %880 = vmatmul.mubr.f32.gmra.mrb[0].mxu0 %v724
    %v881 = vpop.f32.mrb[0].mxu0
    %v882 = vadd.f32 %v768, %v881
    %v883 = vpop.f32.mrb[0].mxu0
    %884 = vmatprep.mubr.f32.mxu0 0.0
    %885 = vmatmul.mubr.f32.gmra.mrb[0].mxu0 %v725
    %v886 = vpop.f32.mrb[0].mxu0
    %v887 = vadd.f32 %v768, %v886
    %v888 = vpop.f32.mrb[0].mxu0
    %889 = vmatprep.mubr.f32.mxu0 0.0
    %890 = vmatmul.mubr.f32.gmra.mrb[0].mxu0 %v726
    %v891 = vpop.f32.mrb[0].mxu0
    %v892 = vadd.f32 %v768, %v891
    %v893 = vpop.f32.mrb[0].mxu0
    %894 = vmatprep.mubr.f32.mxu0 0.0
    %895 = vmatmul.mubr.f32.gmra.mrb[0].mxu0 %v727
    %v896 = vpop.f32.mrb[0].mxu0
    %v897 = vadd.f32 %v768, %v896
    %v898 = vpop.f32.mrb[0].mxu0
    %899 = vmatprep.mubr.f32.mxu0 0.0
    %900 = vmatmul.mubr.f32.gmra.mrb[0].mxu0 %v728
    %v901 = vpop.f32.mrb[0].mxu0
    %v902 = vadd.f32 %v768, %v901
    %v903 = vpop.f32.mrb[0].mxu0
    %904 = vmatprep.mubr.f32.mxu0 0.0
    %905 = vmatmul.mubr.f32.gmra.mrb[0].mxu0 %v729
    %v906 = vpop.f32.mrb[0].mxu0
    %v907 = vadd.f32 %v768, %v906
    %v908 = vpop.f32.mrb[0].mxu0
    %909 = vmatprep.mubr.f32.mxu0 0.0
    %910 = vmatmul.mubr.f32.gmra.mrb[0].mxu0 %v730
    %v911 = vpop.f32.mrb[0].mxu0
    %v912 = vadd.f32 %v768, %v911
    %v913 = vpop.f32.mrb[0].mxu0
    %914 = vmatprep.mubr.f32.mxu0 0.0
    %915 = vmatmul.mubr.f32.gmra.mrb[0].mxu0 %v731
    %v916 = vpop.f32.mrb[0].mxu0
    %v917 = vadd.f32 %v768, %v916
    %v918 = vpop.f32.mrb[0].mxu0
    %919 = vmatprep.mubr.f32.mxu0 0.0
    %920 = vmatmul.mubr.f32.gmra.mrb[0].mxu0 %v732
    %v921 = vpop.f32.mrb[0].mxu0
    %v922 = vadd.f32 %v768, %v921
    %v923 = vpop.f32.mrb[0].mxu0
    %924 = vmatprep.mubr.f32.mxu0 0.0
    %925 = vmatmul.mubr.f32.gmra.mrb[0].mxu0 %v733
    %v926 = vpop.f32.mrb[0].mxu0
    %v927 = vadd.f32 %v768, %v926
    %v928 = vpop.f32.mrb[0].mxu0
    %929 = vmatprep.mubr.f32.mxu0 0.0
    %930 = vmatmul.mubr.f32.gmra.mrb[0].mxu0 %v734
    %v931 = vpop.f32.mrb[0].mxu0
    %v932 = vadd.f32 %v768, %v931
    %v933 = vpop.f32.mrb[0].mxu0
    %934 = vmatprep.mubr.f32.mxu0 0.0
    %935 = vmatmul.mubr.f32.gmra.mrb[0].mxu0 %v735
    %v936 = vpop.f32.mrb[0].mxu0
    %v937 = vadd.f32 %v768, %v936
    %v938 = vpop.f32.mrb[0].mxu0
    %939 = vmatprep.mubr.f32.mxu0 0.0
    %940 = vmatmul.mubr.f32.gmra.mrb[0].mxu0 %v736
    %v941 = vpop.f32.mrb[0].mxu0
    %v942 = vadd.f32 %v768, %v941
    %v943 = vpop.f32.mrb[0].mxu0
    %944 = vmatprep.mubr.f32.mxu0 0.0
    %945 = vmatmul.mubr.f32.gmra.mrb[0].mxu0 %v737
    %v946 = vpop.f32.mrb[0].mxu0
    %v947 = vadd.f32 %v768, %v946
    %v948 = vpop.f32.mrb[0].mxu0
    %949 = vmatprep.mubr.f32.mxu0 0.0
    %950 = vmatmul.mubr.f32.gmra.mrb[0].mxu0 %v738
    %v951 = vpop.f32.mrb[0].mxu0
    %v952 = vadd.f32 %v768, %v951
    %v953 = vpop.f32.mrb[0].mxu0
    %954 = vmatprep.mubr.f32.mxu0 0.0
    %955 = vmatmul.mubr.f32.gmra.mrb[0].mxu0 %v739
    %v956 = vpop.f32.mrb[0].mxu0
    %v957 = vadd.f32 %v768, %v956
    %v958 = vpop.f32.mrb[0].mxu0
    %959 = vmatprep.mubr.f32.mxu0 0.0
    %960 = vmatmul.mubr.f32.gmra.mrb[0].mxu0 %v740
    %v961 = vpop.f32.mrb[0].mxu0
    %v962 = vadd.f32 %v768, %v961
    %v963 = vpop.f32.mrb[0].mxu0
    %964 = vmatprep.mubr.f32.mxu0 0.0
    %965 = vmatmul.mubr.f32.gmra.mrb[0].mxu0 %v741
    %v966 = vpop.f32.mrb[0].mxu0
    %v967 = vadd.f32 %v768, %v966
    %v968 = vpop.f32.mrb[0].mxu0
    %969 = vmatprep.mubr.f32.mxu0 0.0
    %970 = vmatmul.mubr.f32.gmra.mrb[0].mxu0 %v742
    %v971 = vpop.f32.mrb[0].mxu0
    %v972 = vadd.f32 %v768, %v971
    %v973 = vpop.f32.mrb[0].mxu0
    %974 = vmatprep.mubr.f32.mxu0 0.0
    %975 = vmatmul.mubr.f32.gmra.mrb[0].mxu0 %v743
    %v976 = vpop.f32.mrb[0].mxu0
    %v977 = vadd.f32 %v768, %v976
    %v978 = vpop.f32.mrb[0].mxu0
    %979 = vmatprep.mubr.f32.mxu0 0.0
    %980 = vmatmul.mubr.f32.gmra.mrb[0].mxu0 %v744
    %v981 = vpop.f32.mrb[0].mxu0
    %v982 = vadd.f32 %v768, %v981
    %v983 = vpop.f32.mrb[0].mxu0
    %984 = vmatprep.mubr.f32.mxu0 0.0
    %985 = vmatmul.mubr.f32.gmra.mrb[0].mxu0 %v745
    %v986 = vpop.f32.mrb[0].mxu0
    %v987 = vadd.f32 %v768, %v986
    %v988 = vpop.f32.mrb[0].mxu0
    %989 = vmatprep.mubr.f32.mxu0 0.0
    %990 = vmatmul.mubr.f32.gmra.mrb[0].mxu0 %v746
    %v991 = vpop.f32.mrb[0].mxu0
    %v992 = vadd.f32 %v768, %v991
    %v993 = vpop.f32.mrb[0].mxu0
    %994 = vdwg.mxu0
    %995 = vst [vmem:[#allocation2] sm:$0xff] %v837
    %996 = vst [vmem:[#allocation2 + $0x8] sm:$0xff] %v842
    %997 = vst [vmem:[#allocation2 + $0x10] sm:$0xff] %v847
    %998 = vst [vmem:[#allocation2 + $0x18] sm:$0xff] %v852
    %999 = vst [vmem:[#allocation2 + $0x20] sm:$0xff] %v857
    %1000 = vst [vmem:[#allocation2 + $0x28] sm:$0xff] %v862
    %1001 = vst [vmem:[#allocation2 + $0x30] sm:$0xff] %v867
    %1002 = vst [vmem:[#allocation2 + $0x38] sm:$0xff] %v872
    %1003 = vst [vmem:[#allocation2 + $0x40] sm:$0xff] %v877
    %1004 = vst [vmem:[#allocation2 + $0x48] sm:$0xff] %v882
    %1005 = vst [vmem:[#allocation2 + $0x50] sm:$0xff] %v887
    %1006 = vst [vmem:[#allocation2 + $0x58] sm:$0xff] %v892
    %1007 = vst [vmem:[#allocation2 + $0x60] sm:$0xff] %v897
    %1008 = vst [vmem:[#allocation2 + $0x68] sm:$0xff] %v902
    %1009 = vst [vmem:[#allocation2 + $0x70] sm:$0xff] %v907
    %1010 = vst [vmem:[#allocation2 + $0x78] sm:$0xff] %v912
    %1011 = vst [vmem:[#allocation2 + $0x80] sm:$0xff] %v917
    %1012 = vst [vmem:[#allocation2 + $0x88] sm:$0xff] %v922
    %1013 = vst [vmem:[#allocation2 + $0x90] sm:$0xff] %v927
    %1014 = vst [vmem:[#allocation2 + $0x98] sm:$0xff] %v932
    %1015 = vst [vmem:[#allocation2 + $0xa0] sm:$0xff] %v937
    %1016 = vst [vmem:[#allocation2 + $0xa8] sm:$0xff] %v942
    %1017 = vst [vmem:[#allocation2 + $0xb0] sm:$0xff] %v947
    %1018 = vst [vmem:[#allocation2 + $0xb8] sm:$0xff] %v952
    %1019 = vst [vmem:[#allocation2 + $0xc0] sm:$0xff] %v957
    %1020 = vst [vmem:[#allocation2 + $0xc8] sm:$0xff] %v962
    %1021 = vst [vmem:[#allocation2 + $0xd0] sm:$0xff] %v967
    %1022 = vst [vmem:[#allocation2 + $0xd8] sm:$0xff] %v972
    %1023 = vst [vmem:[#allocation2 + $0xe0] sm:$0xff] %v977
    %1024 = vst [vmem:[#allocation2 + $0xe8] sm:$0xff] %v982
    %1025 = vst [vmem:[#allocation2 + $0xf0] sm:$0xff] %v987
    %1026 = vst [vmem:[#allocation2 + $0xf8] sm:$0xff] %v992
    // Predicated region
    $region30: #{_lambda_.1} parent=1 // pred_check
      _
    $region31: #{_lambda_.1} parent=1 // pred_check_branch
      %1028 = sbr.rel (0) target = $region33
    $region32: #{_lambda_.1} parent=1 // pred_region
      %s1030 = ssub.s32 4096, 4096
      %1031 = vsyncadd [#allocation3], %s1030
      %s1032 = sshll.u32 [#allocation2], 4
      %s1033 = int_to_ptr.vmem [resolvable:$true] %s1032
      %1038 = dma.vmem_to_hbm [thread:$0]  %s1033, 4096, %s7, [#allocation3], 128, 128, 8
    $region33: #{_lambda_.1} parent=1 // pred_fallthru
      _
    // Predicated region
    $region34: #{_lambda_.1} parent=1 // pred_check
      _
    $region35: #{_lambda_.1} parent=1 // pred_check_branch
      %1040 = sbr.rel (0) target = $region37
    $region36: #{_lambda_.1} parent=1 // pred_region
      %1041 = dma.done [#allocation3], 4096
    $region37: #{_lambda_.1} parent=1 // pred_fallthru
      _
    %1042 = vsyncpa [#allocation3], 1

</llo_original>
